<compile_context>
chip_gen: v5e
topology: v5e:2x2
jax: 0.10.0
libtpu: 0.0.40
codegen_flags: <defaults>
</compile_context>

<pallas_src>
import jax
import jax.numpy as jnp
import numpy as np
from jax.experimental import pallas as pl
from jax.experimental.pallas import tpu as pltpu


# ---------------------------------------------------------------------------
# Helpers
# ---------------------------------------------------------------------------
def _round_up(x, m):
    return ((x + m - 1) // m) * m


def _device_tile_caps():
    """Per-generation tile caps + scoped VMEM limit."""
    try:
        vmem = getattr(pltpu.get_tpu_info(), "vmem_capacity_bytes", 64 << 20)
    except Exception:  # CPU / interpret / unknown backend
        vmem = 64 << 20
    if vmem >= (96 << 20):
        # v5e / v6e: 128 MiB physical VMEM. ~16-18 MiB double-buffered f32
        # footprint at these caps, well under the raised 64 MiB scoped limit
        # (v5e's 16 MiB scoped default would otherwise be exceeded).
        return dict(tm_cap=512, tn_cap=1024, tk_cap=1024, vmem_limit=64 << 20)
    # v7x: 64 MiB physical VMEM shared by 2 TCs -> stay under ~28 MiB scoped.
    return dict(tm_cap=512, tn_cap=512, tk_cap=1024, vmem_limit=28 << 20)


# ---------------------------------------------------------------------------
# Batched matmul + bias kernel:  out[g] = x[g] @ w[g] + b[g]
#   Bias is folded into the k==0 init; accumulation happens directly in the
#   resident f32 output block (no scratch accumulator).
# ---------------------------------------------------------------------------
def _mm_bias_kernel(x_ref, w_ref, b_ref, o_ref):
    @pl.when(pl.program_id(3) == 0)
    def _():
        o_ref[...] = jnp.broadcast_to(b_ref[...].astype(jnp.float32),
                                      o_ref.shape)

    o_ref[...] += jnp.dot(x_ref[...], w_ref[...],
                          preferred_element_type=jnp.float32)


def batched_matmul_bias(x, prepared):
    """x: (G, M, K) ; prepared holds padded w (G, Kp, Np), b (G, 1, Np)."""
    G, M, K = x.shape
    w, b = prepared["w"], prepared["b"]
    Kp, Np = w.shape[1], w.shape[2]
    N = prepared["N"]
    tk, tn = prepared["tk"], prepared["tn"]

    # Cast activations to the weight compute dtype (no-op in the f32 default).
    if x.dtype != w.dtype:
        x = x.astype(w.dtype)

    sub = 8 if w.dtype == jnp.float32 else 16     # sublane alignment
    tm = min(prepared["tm_cap"], _round_up(M, sub))
    Mp = _round_up(M, tm)

    # Pad activations only if actually needed (skip the extra HBM round trip).
    if Mp != M or Kp != K:
        x = jnp.pad(x, ((0, 0), (0, Mp - M), (0, Kp - K)))

    # v7x megacore: a (1,1,1,K) grid leaves one TensorCore idle -> split j.
    if G == 1 and Mp == tm and Np == tn and tn % 256 == 0:
        tn //= 2

    grid = (G, Mp // tm, Np // tn, Kp // tk)

    out = pl.pallas_call(
        _mm_bias_kernel,
        out_shape=jax.ShapeDtypeStruct((G, Mp, Np), jnp.float32),
        grid_spec=pltpu.PrefetchScalarGridSpec(
            num_scalar_prefetch=0,
            grid=grid,
            in_specs=[
                pl.BlockSpec((pl.Squeezed(), tm, tk),
                             lambda g, i, j, k: (g, i, k)),
                pl.BlockSpec((pl.Squeezed(), tk, tn),
                             lambda g, i, j, k: (g, k, j)),
                pl.BlockSpec((pl.Squeezed(), 1, tn),
                             lambda g, i, j, k: (g, 0, j)),
            ],
            out_specs=pl.BlockSpec((pl.Squeezed(), tm, tn),
                                   lambda g, i, j, k: (g, i, j)),
        ),
        compiler_params=pltpu.CompilerParams(
            dimension_semantics=("parallel", "parallel", "parallel",
                                 "arbitrary"),
            vmem_limit_bytes=prepared["vmem_limit"]),
    )(x, w, b)

    # Slice only if padding actually happened.
    if Mp != M or Np != N:
        out = out[:, :M, :N]
    return out


# ---------------------------------------------------------------------------
# Parameter init (mimics nn.Linear uniform(-1/sqrt(fan_in))), prepare, forward
# ---------------------------------------------------------------------------
def init_params(key, seq_len, pred_len, enc_in, mode):
    ks = jax.random.split(key, 4)
    params = {}
    b_ci = 1.0 / np.sqrt(seq_len)
    if mode == "CI_loc":
        params["w_loc"] = jax.random.uniform(
            ks[0], (enc_in, pred_len, seq_len), jnp.float32, -b_ci, b_ci)
        params["b_loc"] = jax.random.uniform(
            ks[1], (enc_in, pred_len), jnp.float32, -b_ci, b_ci)
    else:
        params["w_ci"] = jax.random.uniform(
            ks[0], (pred_len, seq_len), jnp.float32, -b_ci, b_ci)
        params["b_ci"] = jax.random.uniform(
            ks[1], (pred_len,), jnp.float32, -b_ci, b_ci)
    b_cd = 1.0 / np.sqrt(seq_len * enc_in)
    params["w_cd"] = jax.random.uniform(
        ks[2], (pred_len * enc_in, seq_len * enc_in), jnp.float32, -b_cd, b_cd)
    params["b_cd"] = jax.random.uniform(
        ks[3], (pred_len * enc_in,), jnp.float32, -b_cd, b_cd)
    return params


def prepare_params(params, mode, seq_len, pred_len, enc_in,
                   compute_dtype=jnp.float32):
    """One-time weight prep: mode-specific fold + padding + dtype cast."""
    L, P, C = seq_len, pred_len, enc_in
    if mode == "CI_glob":
        w = params["w_ci"].T[None]                         # (1, L, P)
        b = params["b_ci"][None, None, :]                  # (1, 1, P)
    elif mode == "CI_loc":
        w = jnp.transpose(params["w_loc"], (0, 2, 1))      # (C, L, P)
        b = params["b_loc"][:, None, :]                    # (C, 1, P)
    elif mode == "CD":
        w = params["w_cd"].T[None]                         # (1, L*C, P*C)
        b = params["b_cd"][None, None, :]                  # (1, 1, P*C)
    elif mode == "Delta":
        # Fold the shared CI linear into the CD weight: one matmul at run time.
        w_ci_eff = jnp.kron(params["w_ci"].T,
                            jnp.eye(C, dtype=params["w_cd"].dtype))
        w = (params["w_cd"].T + w_ci_eff)[None]            # (1, L*C, P*C)
        b = (params["b_cd"] + jnp.repeat(params["b_ci"], C))[None, None, :]
    else:
        raise ValueError(f"unknown channel_handling: {mode}")

    G, K, N = w.shape
    caps = _device_tile_caps()
    tk = min(caps["tk_cap"], _round_up(K, 128))
    tn = min(caps["tn_cap"], _round_up(N, 128))
    Kp, Np = _round_up(K, tk), _round_up(N, tn)

    w_pad = w if (Kp == K and Np == N) else jnp.pad(
        w, ((0, 0), (0, Kp - K), (0, Np - N)))
    b_pad = b if Np == N else jnp.pad(b, ((0, 0), (0, 0), (0, Np - N)))

    prepared = {
        "w": w_pad.astype(compute_dtype),      # padded, compute-dtype weights
        "b": b_pad.astype(jnp.float32),        # bias stays f32 (folded in acc)
        "K": K, "N": N, "tk": tk, "tn": tn,
        "tm_cap": caps["tm_cap"], "vmem_limit": caps["vmem_limit"],
    }
    # Keep an unpadded f32 copy only when it is small: used by the tiny-problem
    # XLA fallback path (big weights never take that path anyway).
    if K * N <= 512 * 512:
        prepared["w_raw"] = w.astype(jnp.float32)
        prepared["b_raw"] = b.astype(jnp.float32)
    return prepared


_SMALL_MATMUL_FLOPS = 2 * 256 ** 3   # below this a fused XLA dot wins


def model_forward(x, prepared, mode, pred_len, *, force_pallas=False):
    B, L, C = x.shape
    P = pred_len

    if mode == "CI_glob":
        # (B*C, L) @ (L, P): channel folded into M for better MXU row fill.
        xm = jnp.transpose(x, (0, 2, 1)).reshape(1, B * C, L)
    elif mode == "CI_loc":
        xm = jnp.transpose(x, (2, 0, 1))                   # (C, B, L)
    else:
        xm = x.reshape(1, B, L * C)                        # CD / Delta

    G, M, K = xm.shape
    flops = 2 * G * M * prepared["K"] * prepared["N"]
    if (not force_pallas) and ("w_raw" in prepared) \
            and flops < _SMALL_MATMUL_FLOPS:
        # Tiny problem: pad/pipeline overhead dominates -> plain XLA dot.
        out = (jnp.einsum("gmk,gkn->gmn", xm.astype(jnp.float32),
                          prepared["w_raw"])
               + prepared["b_raw"])
    else:
        out = batched_matmul_bias(xm, prepared)

    # TODO(synk): consumers that can take a pred-last (lane-dense) layout
    # should consume (B, C, P) directly and skip the final transpose below.
    if mode == "CI_glob":
        return out.reshape(B, C, P).transpose(0, 2, 1)     # (B, P, C)
    if mode == "CI_loc":
        return jnp.transpose(out, (1, 2, 0))               # (B, P, C)
    return out.reshape(B, P, C)                            # CD / Delta


# ---------------------------------------------------------------------------
# Pure-JAX reference mirroring the PyTorch forward (validation only)
# ---------------------------------------------------------------------------
def reference_forward(x, params, mode, pred_len):
    B, L, C = x.shape
    P = pred_len
    if mode == "CI_loc":
        cols = [x[:, :, i] @ params["w_loc"][i].T + params["b_loc"][i]
                for i in range(C)]
        out_ci = jnp.stack(cols, axis=-1)
    else:
        out_ci = (jnp.einsum("blc,pl->bpc", x, params["w_ci"])
                  + params["b_ci"][None, :, None])
    out_cd = (x.reshape(B, -1) @ params["w_cd"].T
              + params["b_cd"]).reshape(B, P, C)
    if mode in ("CI_glob", "CI_loc"):
        return out_ci
    if mode == "CD":
        return out_cd
    return out_ci + out_cd


if __name__ == "__main__":
    batch, seq_len, pred_len, enc_in = 2, 16, 12, 8

    key = jax.random.PRNGKey(0)
    k_x, k_p = jax.random.split(key)
    x = jax.random.normal(k_x, (batch, seq_len, enc_in), dtype=jnp.float32)

    for mode in ("CI_glob", "CI_loc", "CD", "Delta"):
        params = init_params(k_p, seq_len, pred_len, enc_in, mode)
        ref = jax.block_until_ready(
            reference_forward(x, params, mode, pred_len))

        # f32 Pallas kernel path (forced so the kernel runs at toy sizes too).
        prepared = prepare_params(params, mode, seq_len, pred_len, enc_in)
        out = jax.block_until_ready(
            model_forward(x, prepared, mode, pred_len, force_pallas=True))
        assert out.shape == (batch, pred_len, enc_in), (mode, out.shape)
        np.testing.assert_allclose(np.asarray(out), np.asarray(ref),
                                   rtol=1e-4, atol=1e-4)

        # Default dispatch: small-problem XLA fallback at these toy sizes.
        out_small = jax.block_until_ready(
            model_forward(x, prepared, mode, pred_len))
        np.testing.assert_allclose(np.asarray(out_small), np.asarray(ref),
                                   rtol=1e-4, atol=1e-4)

    # bf16 operands / f32 accumulation path (relaxed tolerance).
    params = init_params(k_p, seq_len, pred_len, enc_in, "Delta")
    prepared_bf16 = prepare_params(params, "Delta", seq_len, pred_len, enc_in,
                                   compute_dtype=jnp.bfloat16)
    out_bf16 = jax.block_until_ready(
        model_forward(x, prepared_bf16, "Delta", pred_len, force_pallas=True))
    ref = reference_forward(x, params, "Delta", pred_len)
    np.testing.assert_allclose(np.asarray(out_bf16), np.asarray(ref),
                               rtol=5e-2, atol=5e-2)

    print("KERNEL_OK")
</pallas_src>

<mosaic_0001>
module attributes {stable_mosaic.version = 11 : i64} {
  func.func @_mm_bias_kernel(%arg0: i32, %arg1: i32, %arg2: i32, %arg3: i32, %arg4: memref<1x16x128xf32, #tpu.memory_space<vmem>>, %arg5: memref<1x128x128xf32, #tpu.memory_space<vmem>>, %arg6: memref<1x1x128xf32, #tpu.memory_space<vmem>>, %arg7: memref<1x16x128xf32, #tpu.memory_space<vmem>>) attributes {dimension_semantics = [#tpu.dimension_semantics<parallel>, #tpu.dimension_semantics<parallel>, #tpu.dimension_semantics<parallel>, #tpu.dimension_semantics<arbitrary>], iteration_bounds = array<i64: 1, 1, 1, 1>, scalar_prefetch = 0 : i64, scratch_operands = 0 : i64, tpu.core_type = #tpu.core_type<tc>, window_params = [{transform_indices = @transform_0, window_bounds = array<i64: 1, 16, 128>}, {transform_indices = @transform_1, window_bounds = array<i64: 1, 128, 128>}, {transform_indices = @transform_2, window_bounds = array<i64: 1, 1, 128>}, {transform_indices = @transform_3, window_bounds = array<i64: 1, 16, 128>}]} {
    %c0_i32 = arith.constant 0 : i32
    %0 = arith.cmpi eq, %arg3, %c0_i32 : i32
    %1 = arith.extui %0 : i1 to i32
    %c0_i32_0 = arith.constant 0 : i32
    %2 = arith.cmpi ne, %1, %c0_i32_0 : i32
    scf.if %2 {
      %c0_12 = arith.constant 0 : index
      %c0_13 = arith.constant 0 : index
      %c0_14 = arith.constant 0 : index
      %14 = vector.load %arg6[%c0_12, %c0_13, %c0_14] : memref<1x1x128xf32, #tpu.memory_space<vmem>>, vector<1x1x128xf32>
      %15 = vector.shape_cast %14 : vector<1x1x128xf32> to vector<1x128xf32>
      %16 = vector.shape_cast %15 : vector<1x128xf32> to vector<1x128xf32>
      %17 = vector.broadcast %16 : vector<1x128xf32> to vector<16x128xf32>
      %c0_15 = arith.constant 0 : index
      %c0_16 = arith.constant 0 : index
      %c0_17 = arith.constant 0 : index
      %18 = vector.load %arg7[%c0_15, %c0_16, %c0_17] : memref<1x16x128xf32, #tpu.memory_space<vmem>>, vector<1x16x128xf32>
      %19 = vector.shape_cast %18 : vector<1x16x128xf32> to vector<16x128xf32>
      %20 = vector.shape_cast %17 : vector<16x128xf32> to vector<1x16x128xf32>
      tpu.vector_store %arg7[%c0_15, %c0_16, %c0_17], %20 {strides = array<i32>} : memref<1x16x128xf32, #tpu.memory_space<vmem>>, vector<1x16x128xf32>,
    } else {
    }
    %c0 = arith.constant 0 : index
    %c0_1 = arith.constant 0 : index
    %c0_2 = arith.constant 0 : index
    %3 = vector.load %arg7[%c0, %c0_1, %c0_2] : memref<1x16x128xf32, #tpu.memory_space<vmem>>, vector<1x16x128xf32>
    %4 = vector.shape_cast %3 : vector<1x16x128xf32> to vector<16x128xf32>
    %c0_3 = arith.constant 0 : index
    %c0_4 = arith.constant 0 : index
    %c0_5 = arith.constant 0 : index
    %5 = vector.load %arg4[%c0_3, %c0_4, %c0_5] : memref<1x16x128xf32, #tpu.memory_space<vmem>>, vector<1x16x128xf32>
    %6 = vector.shape_cast %5 : vector<1x16x128xf32> to vector<16x128xf32>
    %c0_6 = arith.constant 0 : index
    %c0_7 = arith.constant 0 : index
    %c0_8 = arith.constant 0 : index
    %7 = vector.load %arg5[%c0_6, %c0_7, %c0_8] : memref<1x128x128xf32, #tpu.memory_space<vmem>>, vector<1x128x128xf32>
    %8 = vector.shape_cast %7 : vector<1x128x128xf32> to vector<128x128xf32>
    %cst = arith.constant dense<0.000000e+00> : vector<16x128xf32>
    %9 = tpu.matmul %6, %8, %cst {dimension_numbers = #tpu.dot_dimension_numbers<[1], [0], [0], [1], [0, 0, 1, 1], [], []>} : vector<16x128xf32>, vector<128x128xf32>, vector<16x128xf32> -> vector<16x128xf32>
    %10 = arith.addf %4, %9 : vector<16x128xf32>
    %c0_9 = arith.constant 0 : index
    %c0_10 = arith.constant 0 : index
    %c0_11 = arith.constant 0 : index
    %11 = vector.load %arg7[%c0_9, %c0_10, %c0_11] : memref<1x16x128xf32, #tpu.memory_space<vmem>>, vector<1x16x128xf32>
    %12 = vector.shape_cast %11 : vector<1x16x128xf32> to vector<16x128xf32>
    %13 = vector.shape_cast %10 : vector<16x128xf32> to vector<1x16x128xf32>
    tpu.vector_store %arg7[%c0_9, %c0_10, %c0_11], %13 {strides = array<i32>} : memref<1x16x128xf32, #tpu.memory_space<vmem>>, vector<1x16x128xf32>,
    return
  }
  func.func @transform_0(%arg0: i32, %arg1: i32, %arg2: i32, %arg3: i32) -> (i32, i32, i32) {
    %c0_i32 = arith.constant 0 : i32
    return %arg0, %arg1, %arg3 : i32, i32, i32
  }
  func.func @transform_1(%arg0: i32, %arg1: i32, %arg2: i32, %arg3: i32) -> (i32, i32, i32) {
    %c0_i32 = arith.constant 0 : i32
    return %arg0, %arg3, %arg2 : i32, i32, i32
  }
  func.func @transform_2(%arg0: i32, %arg1: i32, %arg2: i32, %arg3: i32) -> (i32, i32, i32) {
    %c0_i32 = arith.constant 0 : i32
    %c0_i32_0 = arith.constant 0 : i32
    return %arg0, %c0_i32, %arg2 : i32, i32, i32
  }
  func.func @transform_3(%arg0: i32, %arg1: i32, %arg2: i32, %arg3: i32) -> (i32, i32, i32) {
    %c0_i32 = arith.constant 0 : i32
    return %arg0, %arg1, %arg2 : i32, i32, i32
  }
}

</mosaic_0001>

<llo_original>
// kernel: tpu_custom_call.1
$region0: #{tpu_custom_call.1}
  #allocation0 [shape = 'u32[]', space=smem, size = 0x4, offset = 0x4, fixed_abs, tag = 'smem constant byte address 0x4 - core index']
  #allocation1 [shape = 'u32[72,128]{1,0:T(1,128)}', space=vmem, size = 0x9000, scoped, tag = 'internal scratch']
  %s0 = inlined_call_operand.hbm [shape: f32[1,16,128], index: 0, kind: input, shape index: {}]
  %s1 = inlined_call_operand.hbm [shape: f32[1,128,128], index: 1, kind: input, shape index: {}]
  %s2 = inlined_call_operand.vmem [shape: f32[1,1,128], index: 2, kind: input, shape index: {}]
  %s3 = inlined_call_operand.hbm [shape: f32[1,16,128], index: 3, kind: output, shape index: {}]
  %s4 = sld [smem:[#allocation0]]
  $region34: #{tpu_custom_call.1} parent=0
    _
  %s6 = ssub.s32 1, %s4
  %s7 = scalar_select 0, %s6, %s4
  $region1: #{tpu_custom_call.1} parent=0
    #allocation2 [shape = 'u8[8192]{0}', space=vmem, size = 0x2000, scoped, tag = 'input window, operand 0, single buffered']
    #allocation3 [shape = 's32[1]{0}', space=sflag, size = 0x4, scoped, tag = 'scoped memory for tpu_custom_call.1']
    #allocation4 [shape = 's32[1]{0}', space=sflag, size = 0x4, scoped, tag = 'scoped memory for tpu_custom_call.1']
    #allocation5 [shape = 'u8[65536]{0}', space=vmem, size = 0x10000, scoped, tag = 'input window, operand 1, single buffered']
    #allocation6 [shape = 's32[1]{0}', space=sflag, size = 0x4, scoped, tag = 'scoped memory for tpu_custom_call.1']
    #allocation7 [shape = 'u8[8192]{0}', space=vmem, size = 0x2000, scoped, tag = 'output window, operand 0, single buffered']
    %8 = vsyncpa [#allocation3], 0
    %9 = vsyncpa [#allocation6], 0
    %10 = vsyncpa [#allocation4], 0
    // Predicated region
    $region2: #{tpu_custom_call.1} parent=1 // pred_check
      _
    $region3: #{tpu_custom_call.1} parent=1 // pred_check_branch
      %12 = sbr.rel (0) target = $region5
    $region4: #{tpu_custom_call.1} parent=1 // pred_region
      %14 = vsyncadd [#allocation3], 0
      %s15 = sshll.u32 %s0, 4
      %s16 = int_to_ptr.hbm [resolvable:$true] %s15
      %s17 = sshll.u32 [#allocation2], 4
      %s18 = int_to_ptr.vmem [resolvable:$true] %s17
      %23 = dma.hbm_to_vmem [thread:$0]  %s16, 256, %s18, [#allocation3], 128, 128, 8
    $region5: #{tpu_custom_call.1} parent=1 // pred_fallthru
      _
    // Predicated region
    $region6: #{tpu_custom_call.1} parent=1 // pred_check
      _
    $region7: #{tpu_custom_call.1} parent=1 // pred_check_branch
      %25 = sbr.rel (0) target = $region9
    $region8: #{tpu_custom_call.1} parent=1 // pred_region
      %27 = vsyncadd [#allocation6], 0
      %s28 = sshll.u32 %s1, 4
      %s29 = int_to_ptr.hbm [resolvable:$true] %s28
      %s30 = sshll.u32 [#allocation5], 4
      %s31 = int_to_ptr.vmem [resolvable:$true] %s30
      %36 = dma.hbm_to_vmem [thread:$0]  %s29, 2048, %s31, [#allocation6], 128, 128, 8
    $region9: #{tpu_custom_call.1} parent=1 // pred_fallthru
      _
    // Predicated region
    $region10: #{tpu_custom_call.1} parent=1 // pred_check
      _
    $region11: #{tpu_custom_call.1} parent=1 // pred_check_branch
      %38 = sbr.rel (0) target = $region13
    $region12: #{tpu_custom_call.1} parent=1 // pred_region
      _
    $region13: #{tpu_custom_call.1} parent=1 // pred_fallthru
      _
    // Predicated region
    $region14: #{tpu_custom_call.1} parent=1 // pred_check
      _
    $region15: #{tpu_custom_call.1} parent=1 // pred_check_branch
      %40 = sbr.rel (0) target = $region17
    $region16: #{tpu_custom_call.1} parent=1 // pred_region
      %42 = dma.done [#allocation3], 256
    $region17: #{tpu_custom_call.1} parent=1 // pred_fallthru
      _
    // Predicated region
    $region18: #{tpu_custom_call.1} parent=1 // pred_check
      _
    $region19: #{tpu_custom_call.1} parent=1 // pred_check_branch
      %44 = sbr.rel (0) target = $region21
    $region20: #{tpu_custom_call.1} parent=1 // pred_region
      %46 = dma.done [#allocation6], 2048
    $region21: #{tpu_custom_call.1} parent=1 // pred_fallthru
      _
    %p47 = scmp.eq.s32.totalorder 0, 0
    // Predicated region
    $region22: #{tpu_custom_call.1} parent=1 // pred_check
      %p48 = pneg %p47
    $region23: #{tpu_custom_call.1} parent=1 // pred_check_branch
      %50 = sbr.rel (%p48) target = $region25
    $region24: #{tpu_custom_call.1} parent=1 // pred_region
      %v51 = vld [vmem:[%s2] sm:$0x1]
      %v53 = vperm.slane %v51, 0
      %55 = vst [vmem:[#allocation7] sm:$0xff] %v53
      %56 = vst [vmem:[#allocation7 + $0x8] sm:$0xff] %v53
    $region25: #{tpu_custom_call.1} parent=1 // pred_fallthru
      _
    %v57 = vld [vmem:[#allocation7] sm:$0xff]
    %v58 = vld [vmem:[#allocation7 + $0x8] sm:$0xff]
    %v59 = vld [vmem:[#allocation2] sm:$0xff]
    %v60 = vld [vmem:[#allocation2 + $0x8] sm:$0xff]
    %v61 = vld [vmem:[#allocation5] sm:$0xff]
    %v62 = vld [vmem:[#allocation5 + $0x8] sm:$0xff]
    %v63 = vld [vmem:[#allocation5 + $0x10] sm:$0xff]
    %v64 = vld [vmem:[#allocation5 + $0x18] sm:$0xff]
    %v65 = vld [vmem:[#allocation5 + $0x20] sm:$0xff]
    %v66 = vld [vmem:[#allocation5 + $0x28] sm:$0xff]
    %v67 = vld [vmem:[#allocation5 + $0x30] sm:$0xff]
    %v68 = vld [vmem:[#allocation5 + $0x38] sm:$0xff]
    %v69 = vld [vmem:[#allocation5 + $0x40] sm:$0xff]
    %v70 = vld [vmem:[#allocation5 + $0x48] sm:$0xff]
    %v71 = vld [vmem:[#allocation5 + $0x50] sm:$0xff]
    %v72 = vld [vmem:[#allocation5 + $0x58] sm:$0xff]
    %v73 = vld [vmem:[#allocation5 + $0x60] sm:$0xff]
    %v74 = vld [vmem:[#allocation5 + $0x68] sm:$0xff]
    %v75 = vld [vmem:[#allocation5 + $0x70] sm:$0xff]
    %v76 = vld [vmem:[#allocation5 + $0x78] sm:$0xff]
    %77 = vmatpush.msra.mxu0 %v76
    %78 = vmatpush.msra.mxu0 %v75
    %79 = vmatpush.msra.mxu0 %v74
    %80 = vmatpush.msra.mxu0 %v73
    %81 = vmatpush.msra.mxu0 %v72
    %82 = vmatpush.msra.mxu0 %v71
    %83 = vmatpush.msra.mxu0 %v70
    %84 = vmatpush.msra.mxu0 %v69
    %85 = vmatpush.msra.mxu0 %v68
    %86 = vmatpush.msra.mxu0 %v67
    %87 = vmatpush.msra.mxu0 %v66
    %88 = vmatpush.msra.mxu0 %v65
    %89 = vmatpush.msra.mxu0 %v64
    %90 = vmatpush.msra.mxu0 %v63
    %91 = vmatpush.msra.mxu0 %v62
    %92 = vmatpush.msra.mxu0 %v61
    %93 = vmatmul.f32.gmra.mxu0 %v59
    %v94 = vpop.f32.mrf.mxu0
    %v95 = vadd.f32 0.0, %v94
    %96 = vmatmul.f32.gmra.mxu0 %v60
    %v97 = vpop.f32.mrf.mxu0
    %v98 = vadd.f32 0.0, %v97
    %99 = vdwg.mxu0
    %v100 = vadd.f32 %v57, %v95
    %v101 = vadd.f32 %v58, %v98
    %102 = vst [vmem:[#allocation7] sm:$0xff] %v100
    %103 = vst [vmem:[#allocation7 + $0x8] sm:$0xff] %v101
    // Predicated region
    $region26: #{tpu_custom_call.1} parent=1 // pred_check
      _
    $region27: #{tpu_custom_call.1} parent=1 // pred_check_branch
      %105 = sbr.rel (0) target = $region29
    $region28: #{tpu_custom_call.1} parent=1 // pred_region
      %107 = vsyncadd [#allocation4], 0
      %s108 = sshll.u32 [#allocation7], 4
      %s109 = int_to_ptr.vmem [resolvable:$true] %s108
      %s110 = sshll.u32 %s3, 4
      %s111 = int_to_ptr.hbm [resolvable:$true] %s110
      %116 = dma.vmem_to_hbm [thread:$0]  %s109, 256, %s111, [#allocation4], 128, 128, 8
    $region29: #{tpu_custom_call.1} parent=1 // pred_fallthru
      _
    // Predicated region
    $region30: #{tpu_custom_call.1} parent=1 // pred_check
      _
    $region31: #{tpu_custom_call.1} parent=1 // pred_check_branch
      %118 = sbr.rel (0) target = $region33
    $region32: #{tpu_custom_call.1} parent=1 // pred_region
      %120 = dma.done [#allocation4], 256
    $region33: #{tpu_custom_call.1} parent=1 // pred_fallthru
      _
    %121 = vsyncpa [#allocation3], 1
    %122 = vsyncpa [#allocation6], 1
    %123 = vsyncpa [#allocation4], 1

</llo_original>
